<compile_context>
chip_gen: v7x
topology: tpu7x:2x2x1
jax: 0.10.0
libtpu: 0.0.40
codegen_flags: <defaults>
</compile_context>

<pallas_src>
import functools

import jax
import jax.numpy as jnp
from jax.experimental import pallas as pl
from jax.experimental.pallas import tpu as pltpu

# ----------------------------- hyper params -----------------------------
VOCAB = 50
B = 2          # batch (per triplet element)
L = 16         # sequence length (ebd_len)
D = 32         # embedding_dim
K = 8          # kernel_num
KS = (3, 4, 5) # kernel_size (conv11 uses KS[0], conv12 uses KS[1]; conv13 unused in forward)
FC3_OUT = 64

MAX_KS = max(KS[0], KS[1])          # 4 window shifts shared by both conv branches
VPAD = 64                           # vocab chunk padded to 64 lanes -> 4*64 = 256 deep contraction
NC = 2 * K                          # merged conv channels: [conv11 | conv12] = 16

# --- parameter-slab row offsets (all multiples of 8 so in-kernel static slices are tile aligned) ---
ROW_WBIG = 0                        # rows   0..255, lanes 0..15 : folded conv weight (256, 2K)
ROW_W3 = ROW_WBIG + MAX_KS * VPAD   # rows 256..271, lanes 0..63 : fc3.weight.T       (2K, 64)
ROW_BCONV = ROW_W3 + NC             # row  272,      lanes 0..15 : [conv11_b | conv12_b]
ROW_B3 = ROW_BCONV + 8              # row  280,      lanes 0..63 : fc3 bias
SLAB_ROWS = ROW_B3 + 8              # 288 rows total -> slab is (288, 128) f32 (~144 KiB, one DMA)


# ------------------------------- kernel ---------------------------------
def textcnn_kernel(tok_ref, slab_ref, out_ref, *, n, l, ks0, ks1):
    """Whole fused forward (all 3B sequences) in one invocation.

    tok_ref  : (n*l, 1)          int32 token ids (n = 3*B sequences stacked)
    slab_ref : (SLAB_ROWS, 128)  f32 packed parameters (see ROW_* layout above)
    out_ref  : (n, 64)           f32
    """
    nl = n * l

    # ---- LHS: four sublane-shifted copies of the token one-hot -> (nl, 256) ----
    # chunk r at row i holds onehot(tok[(i + r) mod nl]); wrapped / cross-sequence
    # rows only reach window positions masked out below (exact, see mask note).
    tok = tok_ref[...]                                                  # (nl, 1)
    vid = jax.lax.broadcasted_iota(jnp.int32, (nl, VPAD), 1)
    oh0 = (tok == vid).astype(jnp.float32)                              # (nl, 64)
    big_oh = jnp.concatenate(
        [oh0] + [pltpu.roll(oh0, shift=nl - r, axis=0) for r in range(1, MAX_KS)],
        axis=-1)                                                        # (nl, 256)

    # ---- ONE MXU matmul = embedding lookup + conv11 + conv12 (im2col) ----
    wbig = slab_ref[ROW_WBIG:ROW_WBIG + MAX_KS * VPAD, 0:NC]            # (256, 2K)
    bconv = slab_ref[ROW_BCONV:ROW_BCONV + 1, 0:NC]                     # (1, 2K)
    acc = jnp.dot(big_oh, wbig, preferred_element_type=jnp.float32)     # (nl, 2K)
    acc = jnp.maximum(acc + bconv, 0.0)                                 # bias + ReLU

    # Mask window positions that straddle a sequence boundary:
    # cols 0..K-1 (conv11) are valid for pos < l-ks0+1, cols K..2K-1 for pos < l-ks1+1.
    # Exact: ReLU outputs are >= 0, so extra zeros never change the global max.
    pos = jax.lax.broadcasted_iota(jnp.int32, (nl, NC), 0) % l
    col = jax.lax.broadcasted_iota(jnp.int32, (nl, NC), 1)
    valid = jnp.where(col < K, l - ks0 + 1, l - ks1 + 1)
    acc = jnp.where(pos < valid, acc, 0.0)

    # Global max pool over the l positions of each sequence -> (n, 2K),
    # already in torch.cat((x1, x2), 1) order.
    x = jnp.max(acc.reshape(n, l, NC), axis=1)                          # (n, 2K)

    # ---- fc3: one (n, 2K) @ (2K, 64) matmul ----
    w3 = slab_ref[ROW_W3:ROW_W3 + NC, 0:FC3_OUT]                        # (2K, 64)
    b3 = slab_ref[ROW_B3:ROW_B3 + 1, 0:FC3_OUT]                         # (1, 64)
    out = jnp.dot(x, w3, preferred_element_type=jnp.float32) + b3
    out_ref[...] = out.astype(out_ref.dtype)       # dropout is identity in eval mode


# --------------------------- host param packing ---------------------------
def pack_params(params):
    """One-time re-layout: fold the embedding table into the conv weights and pack
    every parameter tensor into a single (SLAB_ROWS, 128) f32 slab (one DMA)."""
    emb = params["embedding"].astype(jnp.float32)                       # (VOCAB, D)
    w11 = params["conv11_w"][:, 0].astype(jnp.float32)                  # (K, ks0, D)
    w12 = params["conv12_w"][:, 0].astype(jnp.float32)                  # (K, ks1, D)

    blocks = []
    for r in range(MAX_KS):
        wr1 = w11[:, r, :].T if r < KS[0] else jnp.zeros((D, K), jnp.float32)   # (D, K)
        wr2 = w12[:, r, :].T if r < KS[1] else jnp.zeros((D, K), jnp.float32)   # (D, K)
        wr = jnp.concatenate([wr1, wr2], axis=1)                        # (D, 2K)
        folded = jnp.dot(emb, wr, precision=jax.lax.Precision.HIGHEST)  # (VOCAB, 2K)
        blocks.append(jnp.pad(folded, ((0, VPAD - VOCAB), (0, 0))))     # (64, 2K)
    wbig = jnp.concatenate(blocks, axis=0)                              # (256, 2K)

    w3t = params["fc3_w"].T.astype(jnp.float32)                         # (2K, 64)
    bconv = jnp.concatenate([params["conv11_b"], params["conv12_b"]])   # (2K,)
    b3 = params["fc3_b"].astype(jnp.float32)                            # (64,)

    slab = jnp.zeros((SLAB_ROWS, 128), jnp.float32)
    slab = slab.at[ROW_WBIG:ROW_WBIG + MAX_KS * VPAD, 0:NC].set(wbig)
    slab = slab.at[ROW_W3:ROW_W3 + NC, 0:FC3_OUT].set(w3t)
    slab = slab.at[ROW_BCONV, 0:NC].set(bconv)
    slab = slab.at[ROW_B3, 0:FC3_OUT].set(b3)
    return slab


# ------------------------------ wrapper ----------------------------------
def forward_pallas(tokens, slab):
    """tokens: (N, L) int32 (N = 3*B stacked triplet sequences) -> (N, 64) f32."""
    n, l = tokens.shape
    tok_col = tokens.reshape(n * l, 1).astype(jnp.int32)

    kernel = functools.partial(textcnn_kernel, n=n, l=l, ks0=KS[0], ks1=KS[1])

    return pl.pallas_call(
        kernel,
        out_shape=jax.ShapeDtypeStruct((n, FC3_OUT), jnp.float32),
        grid=(1,),   # single grid step: whole problem (~0.2 MB) lives in one VMEM tile
        in_specs=[
            pl.BlockSpec((n * l, 1), lambda i: (0, 0)),           # tokens (only per-call-varying input)
            pl.BlockSpec((SLAB_ROWS, 128), lambda i: (0, 0)),     # packed parameter slab
        ],
        out_specs=pl.BlockSpec((n, FC3_OUT), lambda i: (0, 0)),
        compiler_params=pltpu.CompilerParams(
            dimension_semantics=("arbitrary",)),  # do NOT split a µs-scale kernel across cores
    )(tok_col, slab)


def model_g_forward(tokens_1, tokens_2, tokens_3, slab):
    """Equivalent of ModelG.forward (param=None path, eval mode).

    The three token sets are fused into one (3B, L) batch and run through a
    single pallas_call; the (3B, 64) result is split back outside.
    """
    b = tokens_1.shape[0]
    tokens_all = jnp.concatenate([tokens_1, tokens_2, tokens_3], axis=0)
    out_all = forward_pallas(tokens_all, slab)
    return out_all[:b], out_all[b:2 * b], out_all[2 * b:]


# ------------------------- pure-JAX reference -----------------------------
def ref_forward_once(tokens, params):
    ebd_seq = params["embedding"][tokens]                               # exact gather

    def conv_block(w, bias, ks):            # w: (K, 1, ks, D) pytorch layout
        w = w[:, 0]                         # (K, ks, D)
        p = ebd_seq.shape[1] - ks + 1
        windows = jnp.stack([ebd_seq[:, r:r + p, :] for r in range(ks)], axis=2)
        out = jnp.einsum("bprd,krd->bpk", windows, w,
                         precision=jax.lax.Precision.HIGHEST) + bias
        out = jnp.maximum(out, 0.0)
        return out.max(axis=1)              # (B, K)

    x1 = conv_block(params["conv11_w"], params["conv11_b"], KS[0])
    x2 = conv_block(params["conv12_w"], params["conv12_b"], KS[1])
    x = jnp.concatenate([x1, x2], axis=1)
    return jnp.dot(x, params["fc3_w"].T,
                   precision=jax.lax.Precision.HIGHEST) + params["fc3_b"]


# --------------------------------- main -----------------------------------
def init_params(key):
    ks = jax.random.split(key, 8)

    def u(k, shape, fan_in):
        bound = 1.0 / jnp.sqrt(float(fan_in))
        return jax.random.uniform(k, shape, jnp.float32, -bound, bound)

    return {
        "embedding": jax.random.normal(ks[0], (VOCAB, D), jnp.float32),
        "conv11_w": u(ks[1], (K, 1, KS[0], D), KS[0] * D),
        "conv11_b": u(ks[2], (K,), KS[0] * D),
        "conv12_w": u(ks[3], (K, 1, KS[1], D), KS[1] * D),
        "conv12_b": u(ks[4], (K,), KS[1] * D),
        "fc3_w":    u(ks[5], (FC3_OUT, 2 * K), 2 * K),
        "fc3_b":    u(ks[6], (FC3_OUT,), 2 * K),
        # TODO(synk): conv13 / fc1 / fc2 / CrossEntropyLoss exist in __init__ but are unused in forward.
    }


if __name__ == "__main__":
    root = jax.random.PRNGKey(0)
    k_params, k1, k2, k3 = jax.random.split(root, 4)
    params = init_params(k_params)

    tokens_1 = jax.random.randint(k1, (B, L), 0, VOCAB, jnp.int32)
    tokens_2 = jax.random.randint(k2, (B, L), 0, VOCAB, jnp.int32)
    tokens_3 = jax.random.randint(k3, (B, L), 0, VOCAB, jnp.int32)

    # Parameters are packed once, outside the per-call hot path.
    slab = pack_params(params)

    fwd = jax.jit(model_g_forward)
    out1, out2, out3 = fwd(tokens_1, tokens_2, tokens_3, slab)
    jax.block_until_ready((out1, out2, out3))

    # correctness check vs. pure-JAX reference (tolerance leaves headroom for
    # the MXU f32 pass decomposition in the one-hot / fc3 matmuls).
    for toks, out in ((tokens_1, out1), (tokens_2, out2), (tokens_3, out3)):
        ref = ref_forward_once(toks, params)
        assert out.shape == (B, FC3_OUT)
        assert jnp.allclose(out, ref, atol=1e-3, rtol=1e-3), (
            f"max abs err {jnp.max(jnp.abs(out - ref))}")

    print("KERNEL_OK")
</pallas_src>

<mosaic_0001>
module attributes {stable_mosaic.version = 11 : i64} {
  func.func @textcnn_kernel(%arg0: i32, %arg1: memref<96x1xi32, #tpu.memory_space<vmem>>, %arg2: memref<288x128xf32, #tpu.memory_space<vmem>>, %arg3: memref<6x64xf32, #tpu.memory_space<vmem>>) attributes {dimension_semantics = [#tpu.dimension_semantics<arbitrary>], iteration_bounds = array<i64: 1>, scalar_prefetch = 0 : i64, scratch_operands = 0 : i64, tpu.core_type = #tpu.core_type<tc>, window_params = [{pipeline_mode = #tpu.pipeline_mode<synchronous>, transform_indices = @transform_0, window_bounds = array<i64: 96, 1>}, {pipeline_mode = #tpu.pipeline_mode<synchronous>, transform_indices = @transform_1, window_bounds = array<i64: 288, 128>}, {pipeline_mode = #tpu.pipeline_mode<synchronous>, transform_indices = @transform_2, window_bounds = array<i64: 6, 64>}]} {
    %c0 = arith.constant 0 : index
    %c0_0 = arith.constant 0 : index
    %0 = vector.load %arg1[%c0, %c0_0] : memref<96x1xi32, #tpu.memory_space<vmem>>, vector<96x1xi32>
    %1 = tpu.iota {dimensions = array<i32: 1>} : vector<96x64xi32>
    %2 = vector.broadcast %0 : vector<96x1xi32> to vector<96x64xi32>
    %3 = arith.cmpi eq, %2, %1 : vector<96x64xi32>
    %4 = arith.extui %3 : vector<96x64xi1> to vector<96x64xi32>
    %5 = arith.sitofp %4 : vector<96x64xi32> to vector<96x64xf32>
    %c95_i32 = arith.constant 95 : i32
    %6 = tpu.dynamic_rotate %5 by %c95_i32 dim 0 : vector<96x64xf32>, i32 -> vector<96x64xf32>
    %c94_i32 = arith.constant 94 : i32
    %7 = tpu.dynamic_rotate %5 by %c94_i32 dim 0 : vector<96x64xf32>, i32 -> vector<96x64xf32>
    %c93_i32 = arith.constant 93 : i32
    %8 = tpu.dynamic_rotate %5 by %c93_i32 dim 0 : vector<96x64xf32>, i32 -> vector<96x64xf32>
    %9 = tpu.concatenate %5, %6, %7, %8 in 1 : vector<96x64xf32>, vector<96x64xf32>, vector<96x64xf32>, vector<96x64xf32> -> vector<96x256xf32>
    %c0_1 = arith.constant 0 : index
    %c0_2 = arith.constant 0 : index
    %10 = vector.load %arg2[%c0_1, %c0_2] : memref<288x128xf32, #tpu.memory_space<vmem>>, vector<256x16xf32>
    %c272 = arith.constant 272 : index
    %c0_3 = arith.constant 0 : index
    %11 = vector.load %arg2[%c272, %c0_3] : memref<288x128xf32, #tpu.memory_space<vmem>>, vector<1x16xf32>
    %cst = arith.constant dense<0.000000e+00> : vector<96x16xf32>
    %12 = tpu.matmul %9, %10, %cst {dimension_numbers = #tpu.dot_dimension_numbers<[1], [0], [0], [1], [0, 0, 1, 1], [], []>} : vector<96x256xf32>, vector<256x16xf32>, vector<96x16xf32> -> vector<96x16xf32>
    %13 = vector.broadcast %11 : vector<1x16xf32> to vector<96x16xf32>
    %14 = arith.addf %12, %13 : vector<96x16xf32>
    %cst_4 = arith.constant 0.000000e+00 : f32
    %15 = vector.broadcast %cst_4 : f32 to vector<96x16xf32>
    %16 = arith.maximumf %14, %15 : vector<96x16xf32>
    %17 = tpu.iota {dimensions = array<i32: 0>} : vector<96x16xi32>
    %c16_i32 = arith.constant 16 : i32
    %c0_i32 = arith.constant 0 : i32
    %18 = arith.cmpi eq, %c16_i32, %c0_i32 : i32
    %c1_i32 = arith.constant 1 : i32
    %19 = arith.select %18, %c1_i32, %c16_i32 : i32
    %20 = vector.broadcast %19 : i32 to vector<96x16xi32>
    %21 = arith.remsi %17, %20 : vector<96x16xi32>
    %c0_i32_5 = arith.constant 0 : i32
    %22 = vector.broadcast %c0_i32_5 : i32 to vector<96x16xi32>
    %23 = arith.cmpi ne, %21, %22 : vector<96x16xi32>
    %c0_i32_6 = arith.constant 0 : i32
    %24 = vector.broadcast %c0_i32_6 : i32 to vector<96x16xi32>
    %25 = arith.cmpi slt, %21, %24 : vector<96x16xi32>
    %c0_i32_7 = arith.constant 0 : i32
    %26 = arith.cmpi slt, %19, %c0_i32_7 : i32
    %27 = vector.broadcast %26 : i1 to vector<96x16xi1>
    %28 = vector.broadcast %27 : vector<96x16xi1> to vector<96x16xi1>
    %29 = arith.xori %25, %28 : vector<96x16xi1>
    %30 = arith.andi %29, %23 : vector<96x16xi1>
    %31 = vector.broadcast %19 : i32 to vector<96x16xi32>
    %32 = arith.addi %21, %31 : vector<96x16xi32>
    %33 = arith.select %30, %32, %21 : vector<96x16xi1>, vector<96x16xi32>
    %34 = tpu.iota {dimensions = array<i32: 1>} : vector<96x16xi32>
    %c8_i32 = arith.constant 8 : i32
    %35 = vector.broadcast %c8_i32 : i32 to vector<96x16xi32>
    %36 = arith.cmpi slt, %34, %35 : vector<96x16xi32>
    %c14_i32 = arith.constant 14 : i32
    %c13_i32 = arith.constant 13 : i32
    %37 = vector.broadcast %c14_i32 : i32 to vector<96x16xi32>
    %38 = vector.broadcast %c13_i32 : i32 to vector<96x16xi32>
    %39 = arith.select %36, %37, %38 : vector<96x16xi1>, vector<96x16xi32>
    %40 = arith.cmpi slt, %33, %39 : vector<96x16xi32>
    %cst_8 = arith.constant 0.000000e+00 : f32
    %41 = vector.broadcast %cst_8 : f32 to vector<96x16xf32>
    %42 = arith.select %40, %16, %41 : vector<96x16xi1>, vector<96x16xf32>
    %43 = vector.shape_cast %42 : vector<96x16xf32> to vector<6x16x16xf32>
    %cst_9 = arith.constant dense<0xFF800000> : vector<6x16xf32>
    %44 = vector.multi_reduction <maximumf>, %43, %cst_9 [1] : vector<6x16x16xf32> to vector<6x16xf32>
    %c256 = arith.constant 256 : index
    %c0_10 = arith.constant 0 : index
    %45 = vector.load %arg2[%c256, %c0_10] : memref<288x128xf32, #tpu.memory_space<vmem>>, vector<16x64xf32>
    %c280 = arith.constant 280 : index
    %c0_11 = arith.constant 0 : index
    %46 = vector.load %arg2[%c280, %c0_11] : memref<288x128xf32, #tpu.memory_space<vmem>>, vector<1x64xf32>
    %cst_12 = arith.constant dense<0.000000e+00> : vector<6x64xf32>
    %47 = tpu.matmul %44, %45, %cst_12 {dimension_numbers = #tpu.dot_dimension_numbers<[1], [0], [0], [1], [0, 0, 1, 1], [], []>} : vector<6x16xf32>, vector<16x64xf32>, vector<6x64xf32> -> vector<6x64xf32>
    %48 = vector.broadcast %46 : vector<1x64xf32> to vector<6x64xf32>
    %49 = arith.addf %47, %48 : vector<6x64xf32>
    %c0_13 = arith.constant 0 : index
    %c0_14 = arith.constant 0 : index
    %50 = vector.load %arg3[%c0_13, %c0_14] : memref<6x64xf32, #tpu.memory_space<vmem>>, vector<6x64xf32>
    tpu.vector_store %arg3[%c0_13, %c0_14], %49 {strides = array<i32>} : memref<6x64xf32, #tpu.memory_space<vmem>>, vector<6x64xf32>,
    return
  }
  func.func @transform_0(%arg0: i32) -> (i32, i32) {
    %c0_i32 = arith.constant 0 : i32
    %c0_i32_0 = arith.constant 0 : i32
    %c0_i32_1 = arith.constant 0 : i32
    return %c0_i32, %c0_i32_0 : i32, i32
  }
  func.func @transform_1(%arg0: i32) -> (i32, i32) {
    %c0_i32 = arith.constant 0 : i32
    %c0_i32_0 = arith.constant 0 : i32
    %c0_i32_1 = arith.constant 0 : i32
    return %c0_i32, %c0_i32_0 : i32, i32
  }
  func.func @transform_2(%arg0: i32) -> (i32, i32) {
    %c0_i32 = arith.constant 0 : i32
    %c0_i32_0 = arith.constant 0 : i32
    %c0_i32_1 = arith.constant 0 : i32
    return %c0_i32, %c0_i32_0 : i32, i32
  }
}

</mosaic_0001>

<llo_original>
// kernel: model_g_forward.1
$region0: #{model_g_forward.1}
  #allocation0 [shape = 'u32[]', space=smem, size = 0x4, offset = 0x4, fixed_abs, tag = 'smem constant byte address 0x4 - core index']
  #allocation1 [shape = 'u32[144,128]{1,0:T(1,128)}', space=vmem, size = 0x12000, scoped, tag = 'internal scratch']
  %s0 = inlined_call_operand.vmem [shape: s32[96,1], index: 0, kind: input, shape index: {}]
  %s1 = inlined_call_operand.hbm [shape: f32[288,128], index: 1, kind: input, shape index: {}]
  %s2 = inlined_call_operand.vmem [shape: f32[6,64], index: 2, kind: output, shape index: {}]
  %s3 = sld [smem:[#allocation0]]
  $region22: #{model_g_forward.1} parent=0
    _
  %s5 = ssub.s32 1, %s3
  %s6 = scalar_select 0, %s5, %s3
  $region1: #{model_g_forward.1} parent=0
    #allocation2 [shape = 'u8[147456]{0}', space=vmem, size = 0x24000, scoped, tag = 'input window, operand 1, single buffered']
    #allocation3 [shape = 's32[1]{0}', space=sflag, size = 0x4, scoped, tag = 'scoped memory for model_g_forward.1']
    %7 = vsyncpa [#allocation3], 0
    // Predicated region
    $region2: #{model_g_forward.1} parent=1 // pred_check
      _
    $region3: #{model_g_forward.1} parent=1 // pred_check_branch
      %9 = sbr.rel (0) target = $region5
    $region4: #{model_g_forward.1} parent=1 // pred_region
      _
    $region5: #{model_g_forward.1} parent=1 // pred_fallthru
      _
    // Predicated region
    $region6: #{model_g_forward.1} parent=1 // pred_check
      _
    $region7: #{model_g_forward.1} parent=1 // pred_check_branch
      %11 = sbr.rel (0) target = $region9
    $region8: #{model_g_forward.1} parent=1 // pred_region
      %s13 = ssub.s32 4608, 4608
      %14 = vsyncadd [#allocation3], %s13
      %s15 = sshll.u32 [#allocation2], 4
      %s16 = int_to_ptr.vmem [resolvable:$true] %s15
      %21 = dma.hbm_to_vmem [thread:$0]  %s1, 4608, %s16, [#allocation3], 128, 128, 8
    $region9: #{model_g_forward.1} parent=1 // pred_fallthru
      _
    // Predicated region
    $region10: #{model_g_forward.1} parent=1 // pred_check
      _
    $region11: #{model_g_forward.1} parent=1 // pred_check_branch
      %23 = sbr.rel (0) target = $region13
    $region12: #{model_g_forward.1} parent=1 // pred_region
      %24 = dma.done [#allocation3], 4608
    $region13: #{model_g_forward.1} parent=1 // pred_fallthru
      _
    %v25 = vld [vmem:[%s0] sm:$0xff]
    %v26 = vld [vmem:[%s0 + $0x8] sm:$0xff]
    %v27 = vld [vmem:[%s0 + $0x10] sm:$0xff]
    %v28 = vld [vmem:[%s0 + $0x18] sm:$0xff]
    %v29 = vld [vmem:[%s0 + $0x20] sm:$0xff]
    %v30 = vld [vmem:[%s0 + $0x28] sm:$0xff]
    %v31 = vld [vmem:[%s0 + $0x30] sm:$0xff]
    %v32 = vld [vmem:[%s0 + $0x38] sm:$0xff]
    %v33 = vld [vmem:[%s0 + $0x40] sm:$0xff]
    %v34 = vld [vmem:[%s0 + $0x48] sm:$0xff]
    %v35 = vld [vmem:[%s0 + $0x50] sm:$0xff]
    %v36 = vld [vmem:[%s0 + $0x58] sm:$0xff]
    %v37 = vlaneseq
    %v38 = vand.u32 %v37, 127
    %39 = vset.pattern.permute.xlu0 0
    %40 = vperm.xlu0 %39, %v25
    %v41 = vpop.permute.xlu0 %40
    %42 = vset.pattern.permute.xlu0 0
    %43 = vperm.xlu0 %42, %v26
    %v44 = vpop.permute.xlu0 %43
    %45 = vset.pattern.permute.xlu0 0
    %46 = vperm.xlu0 %45, %v27
    %v47 = vpop.permute.xlu0 %46
    %48 = vset.pattern.permute.xlu0 0
    %49 = vperm.xlu0 %48, %v28
    %v50 = vpop.permute.xlu0 %49
    %51 = vset.pattern.permute.xlu0 0
    %52 = vperm.xlu0 %51, %v29
    %v53 = vpop.permute.xlu0 %52
    %54 = vset.pattern.permute.xlu0 0
    %55 = vperm.xlu0 %54, %v30
    %v56 = vpop.permute.xlu0 %55
    %57 = vset.pattern.permute.xlu0 0
    %58 = vperm.xlu0 %57, %v31
    %v59 = vpop.permute.xlu0 %58
    %60 = vset.pattern.permute.xlu0 0
    %61 = vperm.xlu0 %60, %v32
    %v62 = vpop.permute.xlu0 %61
    %63 = vset.pattern.permute.xlu0 0
    %64 = vperm.xlu0 %63, %v33
    %v65 = vpop.permute.xlu0 %64
    %66 = vset.pattern.permute.xlu0 0
    %67 = vperm.xlu0 %66, %v34
    %v68 = vpop.permute.xlu0 %67
    %69 = vset.pattern.permute.xlu0 0
    %70 = vperm.xlu0 %69, %v35
    %v71 = vpop.permute.xlu0 %70
    %72 = vset.pattern.permute.xlu0 0
    %73 = vperm.xlu0 %72, %v36
    %v74 = vpop.permute.xlu0 %73
    %vm75 = vcmp.eq.s32.totalorder %v41, %v38
    %vm76 = vcmp.eq.s32.totalorder %v44, %v38
    %vm77 = vcmp.eq.s32.totalorder %v47, %v38
    %vm78 = vcmp.eq.s32.totalorder %v50, %v38
    %vm79 = vcmp.eq.s32.totalorder %v53, %v38
    %vm80 = vcmp.eq.s32.totalorder %v56, %v38
    %vm81 = vcmp.eq.s32.totalorder %v59, %v38
    %vm82 = vcmp.eq.s32.totalorder %v62, %v38
    %vm83 = vcmp.eq.s32.totalorder %v65, %v38
    %vm84 = vcmp.eq.s32.totalorder %v68, %v38
    %vm85 = vcmp.eq.s32.totalorder %v71, %v38
    %vm86 = vcmp.eq.s32.totalorder %v74, %v38
    %v87 = vsel %vm75, 1, 0
    %v88 = vsel %vm76, 1, 0
    %v89 = vsel %vm77, 1, 0
    %v90 = vsel %vm78, 1, 0
    %v91 = vsel %vm79, 1, 0
    %v92 = vsel %vm80, 1, 0
    %v93 = vsel %vm81, 1, 0
    %v94 = vsel %vm82, 1, 0
    %v95 = vsel %vm83, 1, 0
    %v96 = vsel %vm84, 1, 0
    %v97 = vsel %vm85, 1, 0
    %v98 = vsel %vm86, 1, 0
    %v99 = vcvt.s32.f32 %v87
    %v100 = vcvt.s32.f32 %v88
    %v101 = vcvt.s32.f32 %v89
    %v102 = vcvt.s32.f32 %v90
    %v103 = vcvt.s32.f32 %v91
    %v104 = vcvt.s32.f32 %v92
    %v105 = vcvt.s32.f32 %v93
    %v106 = vcvt.s32.f32 %v94
    %v107 = vcvt.s32.f32 %v95
    %v108 = vcvt.s32.f32 %v96
    %v109 = vcvt.s32.f32 %v97
    %v110 = vcvt.s32.f32 %v98
    %v111 = vrot.slane %v99, 1
    %v112 = vrot.slane %v100, 1
    %v113 = vrot.slane %v101, 1
    %v114 = vrot.slane %v102, 1
    %v115 = vrot.slane %v103, 1
    %v116 = vrot.slane %v104, 1
    %v117 = vrot.slane %v105, 1
    %v118 = vrot.slane %v106, 1
    %v119 = vrot.slane %v107, 1
    %v120 = vrot.slane %v108, 1
    %v121 = vrot.slane %v109, 1
    %v122 = vrot.slane %v110, 1
    %v123 = vlaneseq
    %v124 = vshrl.u32 %v123, 7
    %vm125 = vcmp.lt.s32.totalorder %v124, 7
    %v126 = vsel %vm125, %v121, %v122
    %v127 = vsel %vm125, %v120, %v121
    %v128 = vsel %vm125, %v119, %v120
    %v129 = vsel %vm125, %v118, %v119
    %v130 = vsel %vm125, %v117, %v118
    %v131 = vsel %vm125, %v116, %v117
    %v132 = vsel %vm125, %v115, %v116
    %v133 = vsel %vm125, %v114, %v115
    %v134 = vsel %vm125, %v113, %v114
    %v135 = vsel %vm125, %v112, %v113
    %v136 = vsel %vm125, %v111, %v112
    %v137 = vsel %vm125, %v122, %v111
    %v138 = vrot.slane %v99, 2
    %v139 = vrot.slane %v100, 2
    %v140 = vrot.slane %v101, 2
    %v141 = vrot.slane %v102, 2
    %v142 = vrot.slane %v103, 2
    %v143 = vrot.slane %v104, 2
    %v144 = vrot.slane %v105, 2
    %v145 = vrot.slane %v106, 2
    %v146 = vrot.slane %v107, 2
    %v147 = vrot.slane %v108, 2
    %v148 = vrot.slane %v109, 2
    %v149 = vrot.slane %v110, 2
    %vm150 = vcmp.lt.s32.totalorder %v124, 6
    %v151 = vsel %vm150, %v148, %v149
    %v152 = vsel %vm150, %v147, %v148
    %v153 = vsel %vm150, %v146, %v147
    %v154 = vsel %vm150, %v145, %v146
    %v155 = vsel %vm150, %v144, %v145
    %v156 = vsel %vm150, %v143, %v144
    %v157 = vsel %vm150, %v142, %v143
    %v158 = vsel %vm150, %v141, %v142
    %v159 = vsel %vm150, %v140, %v141
    %v160 = vsel %vm150, %v139, %v140
    %v161 = vsel %vm150, %v138, %v139
    %v162 = vsel %vm150, %v149, %v138
    %v163 = vrot.slane %v99, 3
    %v164 = vrot.slane %v100, 3
    %v165 = vrot.slane %v101, 3
    %v166 = vrot.slane %v102, 3
    %v167 = vrot.slane %v103, 3
    %v168 = vrot.slane %v104, 3
    %v169 = vrot.slane %v105, 3
    %v170 = vrot.slane %v106, 3
    %v171 = vrot.slane %v107, 3
    %v172 = vrot.slane %v108, 3
    %v173 = vrot.slane %v109, 3
    %v174 = vrot.slane %v110, 3
    %vm175 = vcmp.lt.s32.totalorder %v124, 5
    %v176 = vsel %vm175, %v173, %v174
    %v177 = vsel %vm175, %v172, %v173
    %v178 = vsel %vm175, %v171, %v172
    %v179 = vsel %vm175, %v170, %v171
    %v180 = vsel %vm175, %v169, %v170
    %v181 = vsel %vm175, %v168, %v169
    %v182 = vsel %vm175, %v167, %v168
    %v183 = vsel %vm175, %v166, %v167
    %v184 = vsel %vm175, %v165, %v166
    %v185 = vsel %vm175, %v164, %v165
    %v186 = vsel %vm175, %v163, %v164
    %v187 = vsel %vm175, %v174, %v163
    %200 = vrot.lane.b32.xlu0 %v136, 64
    %v201 = vpop.permute.xlu0 %200
    %202 = vrot.lane.b32.xlu0 %v135, 64
    %v203 = vpop.permute.xlu0 %202
    %204 = vrot.lane.b32.xlu0 %v134, 64
    %v205 = vpop.permute.xlu0 %204
    %206 = vrot.lane.b32.xlu0 %v133, 64
    %v207 = vpop.permute.xlu0 %206
    %208 = vrot.lane.b32.xlu0 %v132, 64
    %v209 = vpop.permute.xlu0 %208
    %210 = vrot.lane.b32.xlu0 %v131, 64
    %v211 = vpop.permute.xlu0 %210
    %212 = vrot.lane.b32.xlu0 %v130, 64
    %v213 = vpop.permute.xlu0 %212
    %214 = vrot.lane.b32.xlu0 %v129, 64
    %v215 = vpop.permute.xlu0 %214
    %216 = vrot.lane.b32.xlu0 %v128, 64
    %v217 = vpop.permute.xlu0 %216
    %218 = vrot.lane.b32.xlu0 %v127, 64
    %v219 = vpop.permute.xlu0 %218
    %220 = vrot.lane.b32.xlu0 %v126, 64
    %v221 = vpop.permute.xlu0 %220
    %222 = vrot.lane.b32.xlu0 %v137, 64
    %v223 = vpop.permute.xlu0 %222
    %248 = vrot.lane.b32.xlu0 %v186, 64
    %v249 = vpop.permute.xlu0 %248
    %250 = vrot.lane.b32.xlu0 %v185, 64
    %v251 = vpop.permute.xlu0 %250
    %252 = vrot.lane.b32.xlu0 %v184, 64
    %v253 = vpop.permute.xlu0 %252
    %254 = vrot.lane.b32.xlu0 %v183, 64
    %v255 = vpop.permute.xlu0 %254
    %256 = vrot.lane.b32.xlu0 %v182, 64
    %v257 = vpop.permute.xlu0 %256
    %258 = vrot.lane.b32.xlu0 %v181, 64
    %v259 = vpop.permute.xlu0 %258
    %260 = vrot.lane.b32.xlu0 %v180, 64
    %v261 = vpop.permute.xlu0 %260
    %262 = vrot.lane.b32.xlu0 %v179, 64
    %v263 = vpop.permute.xlu0 %262
    %264 = vrot.lane.b32.xlu0 %v178, 64
    %v265 = vpop.permute.xlu0 %264
    %266 = vrot.lane.b32.xlu0 %v177, 64
    %v267 = vpop.permute.xlu0 %266
    %268 = vrot.lane.b32.xlu0 %v176, 64
    %v269 = vpop.permute.xlu0 %268
    %270 = vrot.lane.b32.xlu0 %v187, 64
    %v271 = vpop.permute.xlu0 %270
    %vm284 = vcmask 523264
    %v285 = vsel %vm284, %v99, %v201
    %v286 = vsel %vm284, %v100, %v203
    %v287 = vsel %vm284, %v101, %v205
    %v288 = vsel %vm284, %v102, %v207
    %v289 = vsel %vm284, %v103, %v209
    %v290 = vsel %vm284, %v104, %v211
    %v291 = vsel %vm284, %v105, %v213
    %v292 = vsel %vm284, %v106, %v215
    %v293 = vsel %vm284, %v107, %v217
    %v294 = vsel %vm284, %v108, %v219
    %v295 = vsel %vm284, %v109, %v221
    %v296 = vsel %vm284, %v110, %v223
    %v297 = vsel %vm284, %v161, %v249
    %v298 = vsel %vm284, %v160, %v251
    %v299 = vsel %vm284, %v159, %v253
    %v300 = vsel %vm284, %v158, %v255
    %v301 = vsel %vm284, %v157, %v257
    %v302 = vsel %vm284, %v156, %v259
    %v303 = vsel %vm284, %v155, %v261
    %v304 = vsel %vm284, %v154, %v263
    %v305 = vsel %vm284, %v153, %v265
    %v306 = vsel %vm284, %v152, %v267
    %v307 = vsel %vm284, %v151, %v269
    %v308 = vsel %vm284, %v162, %v271
    %v309 = vld [vmem:[#allocation2] sm:$0xff]
    %v310 = vld [vmem:[#allocation2 + $0x8] sm:$0xff]
    %v311 = vld [vmem:[#allocation2 + $0x10] sm:$0xff]
    %v312 = vld [vmem:[#allocation2 + $0x18] sm:$0xff]
    %v313 = vld [vmem:[#allocation2 + $0x20] sm:$0xff]
    %v314 = vld [vmem:[#allocation2 + $0x28] sm:$0xff]
    %v315 = vld [vmem:[#allocation2 + $0x30] sm:$0xff]
    %v316 = vld [vmem:[#allocation2 + $0x38] sm:$0xff]
    %v317 = vld [vmem:[#allocation2 + $0x40] sm:$0xff]
    %v318 = vld [vmem:[#allocation2 + $0x48] sm:$0xff]
    %v319 = vld [vmem:[#allocation2 + $0x50] sm:$0xff]
    %v320 = vld [vmem:[#allocation2 + $0x58] sm:$0xff]
    %v321 = vld [vmem:[#allocation2 + $0x60] sm:$0xff]
    %v322 = vld [vmem:[#allocation2 + $0x68] sm:$0xff]
    %v323 = vld [vmem:[#allocation2 + $0x70] sm:$0xff]
    %v324 = vld [vmem:[#allocation2 + $0x78] sm:$0xff]
    %v325 = vld [vmem:[#allocation2 + $0x80] sm:$0xff]
    %v326 = vld [vmem:[#allocation2 + $0x88] sm:$0xff]
    %v327 = vld [vmem:[#allocation2 + $0x90] sm:$0xff]
    %v328 = vld [vmem:[#allocation2 + $0x98] sm:$0xff]
    %v329 = vld [vmem:[#allocation2 + $0xa0] sm:$0xff]
    %v330 = vld [vmem:[#allocation2 + $0xa8] sm:$0xff]
    %v331 = vld [vmem:[#allocation2 + $0xb0] sm:$0xff]
    %v332 = vld [vmem:[#allocation2 + $0xb8] sm:$0xff]
    %v333 = vld [vmem:[#allocation2 + $0xc0] sm:$0xff]
    %v334 = vld [vmem:[#allocation2 + $0xc8] sm:$0xff]
    %v335 = vld [vmem:[#allocation2 + $0xd0] sm:$0xff]
    %v336 = vld [vmem:[#allocation2 + $0xd8] sm:$0xff]
    %v337 = vld [vmem:[#allocation2 + $0xe0] sm:$0xff]
    %v338 = vld [vmem:[#allocation2 + $0xe8] sm:$0xff]
    %v339 = vld [vmem:[#allocation2 + $0xf0] sm:$0xff]
    %v340 = vld [vmem:[#allocation2 + $0xf8] sm:$0xff]
    %v341 = vld [vmem:[#allocation2 + $0x110] sm:$0x1]
    %v342 = vlaneseq
    %v343 = vshrl.u32 %v342, 7
    %v344 = vsub.s32 0, %v343
    %v345 = vrot.slane %v341, %v344
    %346 = vmatprep.subr.mxu0 0.0
    %347 = vmatpush1.msra.mxu0 %v309
    %348 = vmatprep.subr.mxu0 0.0
    %349 = vmatpush1.msra.mxu0 %v310
    %350 = vmatprep.subr.mxu0 0.0
    %351 = vmatpush1.msra.mxu0 %v311
    %352 = vmatprep.subr.mxu0 0.0
    %353 = vmatpush1.msra.mxu0 %v312
    %354 = vmatprep.subr.mxu0 0.0
    %355 = vmatpush1.msra.mxu0 %v313
    %356 = vmatprep.subr.mxu0 0.0
    %357 = vmatpush1.msra.mxu0 %v314
    %358 = vmatprep.subr.mxu0 0.0
    %359 = vmatpush1.msra.mxu0 %v315
    %360 = vmatprep.subr.mxu0 0.0
    %361 = vmatpush1.msra.mxu0 %v316
    %362 = vmatprep.subr.mxu0 0.0
    %363 = vmatpush1.msra.mxu0 %v317
    %364 = vmatprep.subr.mxu0 0.0
    %365 = vmatpush1.msra.mxu0 %v318
    %366 = vmatprep.subr.mxu0 0.0
    %367 = vmatpush1.msra.mxu0 %v319
    %368 = vmatprep.subr.mxu0 0.0
    %369 = vmatpush1.msra.mxu0 %v320
    %370 = vmatprep.subr.mxu0 0.0
    %371 = vmatpush1.msra.mxu0 %v321
    %372 = vmatprep.subr.mxu0 0.0
    %373 = vmatpush1.msra.mxu0 %v322
    %374 = vmatprep.subr.mxu0 0.0
    %375 = vmatpush1.msra.mxu0 %v323
    %376 = vmatprep.subr.mxu0 0.0
    %377 = vmatpush1.msra.mxu0 %v324
    %378 = vmatprep.subr.mxu0 0.0
    %379 = vmatpush1.msra.mxu0 %v325
    %380 = vmatprep.subr.mxu0 0.0
    %381 = vmatpush1.msra.mxu0 %v326
    %382 = vmatprep.subr.mxu0 0.0
    %383 = vmatpush1.msra.mxu0 %v327
    %384 = vmatprep.subr.mxu0 0.0
    %385 = vmatpush1.msra.mxu0 %v328
    %386 = vmatprep.subr.mxu0 0.0
    %387 = vmatpush1.msra.mxu0 %v329
    %388 = vmatprep.subr.mxu0 0.0
    %389 = vmatpush1.msra.mxu0 %v330
    %390 = vmatprep.subr.mxu0 0.0
    %391 = vmatpush1.msra.mxu0 %v331
    %392 = vmatprep.subr.mxu0 0.0
    %393 = vmatpush1.msra.mxu0 %v332
    %394 = vmatprep.subr.mxu0 0.0
    %395 = vmatpush1.msra.mxu0 %v333
    %396 = vmatprep.subr.mxu0 0.0
    %397 = vmatpush1.msra.mxu0 %v334
    %398 = vmatprep.subr.mxu0 0.0
    %399 = vmatpush1.msra.mxu0 %v335
    %400 = vmatprep.subr.mxu0 0.0
    %401 = vmatpush1.msra.mxu0 %v336
    %402 = vmatprep.subr.mxu0 0.0
    %403 = vmatpush1.msra.mxu0 %v337
    %404 = vmatprep.subr.mxu0 0.0
    %405 = vmatpush1.msra.mxu0 %v338
    %406 = vmatprep.subr.mxu0 0.0
    %407 = vmatpush1.msra.mxu0 %v339
    %408 = vmatprep.subr.mxu0 0.0
    %409 = vmatpush1.msra.mxu0 %v340
    %410 = vmatprep.mubr.f32.mxu0 %v297
    %411 = vmatmul.mubr.f32.gmra.mrb[0].mxu0 %v285
    %v412 = vpop.f32.mrb[0].mxu0
    %v413 = vadd.f32 %v345, %v412
    %v414 = vpop.f32.mrb[0].mxu0
    %415 = vmatprep.mubr.f32.mxu0 %v298
    %416 = vmatmul.mubr.f32.gmra.mrb[0].mxu0 %v286
    %v417 = vpop.f32.mrb[0].mxu0
    %v418 = vadd.f32 %v345, %v417
    %v419 = vpop.f32.mrb[0].mxu0
    %420 = vmatprep.mubr.f32.mxu0 %v299
    %421 = vmatmul.mubr.f32.gmra.mrb[0].mxu0 %v287
    %v422 = vpop.f32.mrb[0].mxu0
    %v423 = vadd.f32 %v345, %v422
    %v424 = vpop.f32.mrb[0].mxu0
    %425 = vmatprep.mubr.f32.mxu0 %v300
    %426 = vmatmul.mubr.f32.gmra.mrb[0].mxu0 %v288
    %v427 = vpop.f32.mrb[0].mxu0
    %v428 = vadd.f32 %v345, %v427
    %v429 = vpop.f32.mrb[0].mxu0
    %430 = vmatprep.mubr.f32.mxu0 %v301
    %431 = vmatmul.mubr.f32.gmra.mrb[0].mxu0 %v289
    %v432 = vpop.f32.mrb[0].mxu0
    %v433 = vadd.f32 %v345, %v432
    %v434 = vpop.f32.mrb[0].mxu0
    %435 = vmatprep.mubr.f32.mxu0 %v302
    %436 = vmatmul.mubr.f32.gmra.mrb[0].mxu0 %v290
    %v437 = vpop.f32.mrb[0].mxu0
    %v438 = vadd.f32 %v345, %v437
    %v439 = vpop.f32.mrb[0].mxu0
    %440 = vmatprep.mubr.f32.mxu0 %v303
    %441 = vmatmul.mubr.f32.gmra.mrb[0].mxu0 %v291
    %v442 = vpop.f32.mrb[0].mxu0
    %v443 = vadd.f32 %v345, %v442
    %v444 = vpop.f32.mrb[0].mxu0
    %445 = vmatprep.mubr.f32.mxu0 %v304
    %446 = vmatmul.mubr.f32.gmra.mrb[0].mxu0 %v292
    %v447 = vpop.f32.mrb[0].mxu0
    %v448 = vadd.f32 %v345, %v447
    %v449 = vpop.f32.mrb[0].mxu0
    %450 = vmatprep.mubr.f32.mxu0 %v305
    %451 = vmatmul.mubr.f32.gmra.mrb[0].mxu0 %v293
    %v452 = vpop.f32.mrb[0].mxu0
    %v453 = vadd.f32 %v345, %v452
    %v454 = vpop.f32.mrb[0].mxu0
    %455 = vmatprep.mubr.f32.mxu0 %v306
    %456 = vmatmul.mubr.f32.gmra.mrb[0].mxu0 %v294
    %v457 = vpop.f32.mrb[0].mxu0
    %v458 = vadd.f32 %v345, %v457
    %v459 = vpop.f32.mrb[0].mxu0
    %460 = vmatprep.mubr.f32.mxu0 %v307
    %461 = vmatmul.mubr.f32.gmra.mrb[0].mxu0 %v295
    %v462 = vpop.f32.mrb[0].mxu0
    %v463 = vadd.f32 %v345, %v462
    %v464 = vpop.f32.mrb[0].mxu0
    %465 = vmatprep.mubr.f32.mxu0 %v308
    %466 = vmatmul.mubr.f32.gmra.mrb[0].mxu0 %v296
    %v467 = vpop.f32.mrb[0].mxu0
    %v468 = vadd.f32 %v345, %v467
    %v469 = vpop.f32.mrb[0].mxu0
    %470 = vdwg.mxu0
    %v471 = vmax.f32 %v413, 0.0
    %v472 = vmax.f32 %v418, 0.0
    %v473 = vmax.f32 %v423, 0.0
    %v474 = vmax.f32 %v428, 0.0
    %v475 = vmax.f32 %v433, 0.0
    %v476 = vmax.f32 %v438, 0.0
    %v477 = vmax.f32 %v443, 0.0
    %v478 = vmax.f32 %v448, 0.0
    %v479 = vmax.f32 %v453, 0.0
    %v480 = vmax.f32 %v458, 0.0
    %v481 = vmax.f32 %v463, 0.0
    %v482 = vmax.f32 %v468, 0.0
    %v483 = vadd.s32 %v124, 8
    %v484 = vadd.s32 %v124, 16
    %v485 = vadd.s32 %v124, 24
    %v486 = vadd.s32 %v124, 32
    %v487 = vadd.s32 %v124, 40
    %v488 = vadd.s32 %v124, 48
    %v489 = vadd.s32 %v124, 56
    %v490 = vadd.s32 %v124, 64
    %v491 = vadd.s32 %v124, 72
    %v492 = vadd.s32 %v124, 80
    %v493 = vadd.s32 %v124, 88
    %vm494 = vcmp.lt.s32.totalorder %v124, 0
    %v495 = vsub.s32 0, %v124
    %v496 = vsel %vm494, %v495, %v124
    %v497 = vshrl.u32 %v496, 4
    %v498 = vand.u32 %v496, 15
    %v499 = vsub.s32 0, %v498
    %v500 = vsel %vm494, %v499, %v498
    %vm501 = vcmp.lt.s32.totalorder %v483, 0
    %v502 = vsub.s32 0, %v483
    %v503 = vsel %vm501, %v502, %v483
    %v504 = vshrl.u32 %v503, 4
    %v505 = vand.u32 %v503, 15
    %v506 = vsub.s32 0, %v505
    %v507 = vsel %vm501, %v506, %v505
    %vm508 = vcmp.lt.s32.totalorder %v484, 0
    %v509 = vsub.s32 0, %v484
    %v510 = vsel %vm508, %v509, %v484
    %v511 = vshrl.u32 %v510, 4
    %v512 = vand.u32 %v510, 15
    %v513 = vsub.s32 0, %v512
    %v514 = vsel %vm508, %v513, %v512
    %vm515 = vcmp.lt.s32.totalorder %v485, 0
    %v516 = vsub.s32 0, %v485
    %v517 = vsel %vm515, %v516, %v485
    %v518 = vshrl.u32 %v517, 4
    %v519 = vand.u32 %v517, 15
    %v520 = vsub.s32 0, %v519
    %v521 = vsel %vm515, %v520, %v519
    %vm522 = vcmp.lt.s32.totalorder %v486, 0
    %v523 = vsub.s32 0, %v486
    %v524 = vsel %vm522, %v523, %v486
    %v525 = vshrl.u32 %v524, 4
    %v526 = vand.u32 %v524, 15
    %v527 = vsub.s32 0, %v526
    %v528 = vsel %vm522, %v527, %v526
    %vm529 = vcmp.lt.s32.totalorder %v487, 0
    %v530 = vsub.s32 0, %v487
    %v531 = vsel %vm529, %v530, %v487
    %v532 = vshrl.u32 %v531, 4
    %v533 = vand.u32 %v531, 15
    %v534 = vsub.s32 0, %v533
    %v535 = vsel %vm529, %v534, %v533
    %vm536 = vcmp.lt.s32.totalorder %v488, 0
    %v537 = vsub.s32 0, %v488
    %v538 = vsel %vm536, %v537, %v488
    %v539 = vshrl.u32 %v538, 4
    %v540 = vand.u32 %v538, 15
    %v541 = vsub.s32 0, %v540
    %v542 = vsel %vm536, %v541, %v540
    %vm543 = vcmp.lt.s32.totalorder %v489, 0
    %v544 = vsub.s32 0, %v489
    %v545 = vsel %vm543, %v544, %v489
    %v546 = vshrl.u32 %v545, 4
    %v547 = vand.u32 %v545, 15
    %v548 = vsub.s32 0, %v547
    %v549 = vsel %vm543, %v548, %v547
    %vm550 = vcmp.lt.s32.totalorder %v490, 0
    %v551 = vsub.s32 0, %v490
    %v552 = vsel %vm550, %v551, %v490
    %v553 = vshrl.u32 %v552, 4
    %v554 = vand.u32 %v552, 15
    %v555 = vsub.s32 0, %v554
    %v556 = vsel %vm550, %v555, %v554
    %vm557 = vcmp.lt.s32.totalorder %v491, 0
    %v558 = vsub.s32 0, %v491
    %v559 = vsel %vm557, %v558, %v491
    %v560 = vshrl.u32 %v559, 4
    %v561 = vand.u32 %v559, 15
    %v562 = vsub.s32 0, %v561
    %v563 = vsel %vm557, %v562, %v561
    %vm564 = vcmp.lt.s32.totalorder %v492, 0
    %v565 = vsub.s32 0, %v492
    %v566 = vsel %vm564, %v565, %v492
    %v567 = vshrl.u32 %v566, 4
    %v568 = vand.u32 %v566, 15
    %v569 = vsub.s32 0, %v568
    %v570 = vsel %vm564, %v569, %v568
    %vm571 = vcmp.lt.s32.totalorder %v493, 0
    %v572 = vsub.s32 0, %v493
    %v573 = vsel %vm571, %v572, %v493
    %v574 = vshrl.u32 %v573, 4
    %v575 = vand.u32 %v573, 15
    %v576 = vsub.s32 0, %v575
    %v577 = vsel %vm571, %v576, %v575
    %vm578 = vcmp.ne.s32.totalorder %v500, 0
    %vm579 = vcmp.ne.s32.totalorder %v507, 0
    %vm580 = vcmp.ne.s32.totalorder %v514, 0
    %vm581 = vcmp.ne.s32.totalorder %v521, 0
    %vm582 = vcmp.ne.s32.totalorder %v528, 0
    %vm583 = vcmp.ne.s32.totalorder %v535, 0
    %vm584 = vcmp.ne.s32.totalorder %v542, 0
    %vm585 = vcmp.ne.s32.totalorder %v549, 0
    %vm586 = vcmp.ne.s32.totalorder %v556, 0
    %vm587 = vcmp.ne.s32.totalorder %v563, 0
    %vm588 = vcmp.ne.s32.totalorder %v570, 0
    %vm589 = vcmp.ne.s32.totalorder %v577, 0
    %vm590 = vcmp.lt.s32.totalorder %v500, 0
    %vm591 = vcmp.lt.s32.totalorder %v507, 0
    %vm592 = vcmp.lt.s32.totalorder %v514, 0
    %vm593 = vcmp.lt.s32.totalorder %v521, 0
    %vm594 = vcmp.lt.s32.totalorder %v528, 0
    %vm595 = vcmp.lt.s32.totalorder %v535, 0
    %vm596 = vcmp.lt.s32.totalorder %v542, 0
    %vm597 = vcmp.lt.s32.totalorder %v549, 0
    %vm598 = vcmp.lt.s32.totalorder %v556, 0
    %vm599 = vcmp.lt.s32.totalorder %v563, 0
    %vm600 = vcmp.lt.s32.totalorder %v570, 0
    %vm601 = vcmp.lt.s32.totalorder %v577, 0
    %vm602 = vmand %vm590, %vm578
    %vm603 = vmand %vm591, %vm579
    %vm604 = vmand %vm592, %vm580
    %vm605 = vmand %vm593, %vm581
    %vm606 = vmand %vm594, %vm582
    %vm607 = vmand %vm595, %vm583
    %vm608 = vmand %vm596, %vm584
    %vm609 = vmand %vm597, %vm585
    %vm610 = vmand %vm598, %vm586
    %vm611 = vmand %vm599, %vm587
    %vm612 = vmand %vm600, %vm588
    %vm613 = vmand %vm601, %vm589
    %v614 = vadd.s32 %v500, 16
    %v615 = vadd.s32 %v507, 16
    %v616 = vadd.s32 %v514, 16
    %v617 = vadd.s32 %v521, 16
    %v618 = vadd.s32 %v528, 16
    %v619 = vadd.s32 %v535, 16
    %v620 = vadd.s32 %v542, 16
    %v621 = vadd.s32 %v549, 16
    %v622 = vadd.s32 %v556, 16
    %v623 = vadd.s32 %v563, 16
    %v624 = vadd.s32 %v570, 16
    %v625 = vadd.s32 %v577, 16
    %v626 = vsel %vm602, %v614, %v500
    %v627 = vsel %vm603, %v615, %v507
    %v628 = vsel %vm604, %v616, %v514
    %v629 = vsel %vm605, %v617, %v521
    %v630 = vsel %vm606, %v618, %v528
    %v631 = vsel %vm607, %v619, %v535
    %v632 = vsel %vm608, %v620, %v542
    %v633 = vsel %vm609, %v621, %v549
    %v634 = vsel %vm610, %v622, %v556
    %v635 = vsel %vm611, %v623, %v563
    %v636 = vsel %vm612, %v624, %v570
    %v637 = vsel %vm613, %v625, %v577
    %vm638 = vcmp.lt.s32.totalorder %v38, 8
    %v639 = vsel %vm638, 14, 13
    %vm640 = vcmp.lt.s32.totalorder %v626, %v639
    %vm641 = vcmp.lt.s32.totalorder %v627, %v639
    %vm642 = vcmp.lt.s32.totalorder %v628, %v639
    %vm643 = vcmp.lt.s32.totalorder %v629, %v639
    %vm644 = vcmp.lt.s32.totalorder %v630, %v639
    %vm645 = vcmp.lt.s32.totalorder %v631, %v639
    %vm646 = vcmp.lt.s32.totalorder %v632, %v639
    %vm647 = vcmp.lt.s32.totalorder %v633, %v639
    %vm648 = vcmp.lt.s32.totalorder %v634, %v639
    %vm649 = vcmp.lt.s32.totalorder %v635, %v639
    %vm650 = vcmp.lt.s32.totalorder %v636, %v639
    %vm651 = vcmp.lt.s32.totalorder %v637, %v639
    %v652 = vsel %vm640, %v471, 0.0
    %v653 = vsel %vm641, %v472, 0.0
    %v654 = vsel %vm642, %v473, 0.0
    %v655 = vsel %vm643, %v474, 0.0
    %v656 = vsel %vm644, %v475, 0.0
    %v657 = vsel %vm645, %v476, 0.0
    %v658 = vsel %vm646, %v477, 0.0
    %v659 = vsel %vm647, %v478, 0.0
    %v660 = vsel %vm648, %v479, 0.0
    %v661 = vsel %vm649, %v480, 0.0
    %v662 = vsel %vm650, %v481, 0.0
    %v663 = vsel %vm651, %v482, 0.0
    %vm664 = vcmask 130048
    %v665 = vsel %vm664, %v652, -inf
    %v666 = vsel %vm664, %v653, -inf
    %v667 = vmax.f32 %v665, %v666
    %v668 = vrot.slane %v667, 4
    %v669 = vmax.f32 %v667, %v668
    %v670 = vrot.slane %v669, 2
    %v671 = vmax.f32 %v669, %v670
    %v672 = vrot.slane %v671, 1
    %v673 = vmax.f32 %v671, %v672
    %v674 = vsel %vm664, %v654, -inf
    %v675 = vsel %vm664, %v655, -inf
    %v676 = vmax.f32 %v674, %v675
    %v677 = vrot.slane %v676, 4
    %v678 = vmax.f32 %v676, %v677
    %v679 = vrot.slane %v678, 2
    %v680 = vmax.f32 %v678, %v679
    %v681 = vrot.slane %v680, 1
    %v682 = vmax.f32 %v680, %v681
    %v683 = vsel %vm664, %v656, -inf
    %v684 = vsel %vm664, %v657, -inf
    %v685 = vmax.f32 %v683, %v684
    %v686 = vrot.slane %v685, 4
    %v687 = vmax.f32 %v685, %v686
    %v688 = vrot.slane %v687, 2
    %v689 = vmax.f32 %v687, %v688
    %v690 = vrot.slane %v689, 1
    %v691 = vmax.f32 %v689, %v690
    %v692 = vsel %vm664, %v658, -inf
    %v693 = vsel %vm664, %v659, -inf
    %v694 = vmax.f32 %v692, %v693
    %v695 = vrot.slane %v694, 4
    %v696 = vmax.f32 %v694, %v695
    %v697 = vrot.slane %v696, 2
    %v698 = vmax.f32 %v696, %v697
    %v699 = vrot.slane %v698, 1
    %v700 = vmax.f32 %v698, %v699
    %v701 = vsel %vm664, %v660, -inf
    %v702 = vsel %vm664, %v661, -inf
    %v703 = vmax.f32 %v701, %v702
    %v704 = vrot.slane %v703, 4
    %v705 = vmax.f32 %v703, %v704
    %v706 = vrot.slane %v705, 2
    %v707 = vmax.f32 %v705, %v706
    %v708 = vrot.slane %v707, 1
    %v709 = vmax.f32 %v707, %v708
    %v710 = vsel %vm664, %v662, -inf
    %v711 = vsel %vm664, %v663, -inf
    %v712 = vmax.f32 %v710, %v711
    %v713 = vrot.slane %v712, 4
    %v714 = vmax.f32 %v712, %v713
    %v715 = vrot.slane %v714, 2
    %v716 = vmax.f32 %v714, %v715
    %v717 = vrot.slane %v716, 1
    %v718 = vmax.f32 %v716, %v717
    %v719 = vld [vmem:[#allocation2 + $0x100] sm:$0xff]
    %v720 = vld [vmem:[#allocation2 + $0x108] sm:$0xff]
    %v721 = vld [vmem:[#allocation2 + $0x118] sm:$0x1]
    %v722 = vlaneseq
    %v723 = vshrl.u32 %v722, 7
    %v724 = vsub.s32 0, %v723
    %v725 = vrot.slane %v721, %v724
    %vm732 = vcmask 1041409
    %v733 = vsel %vm732, %v682, %v673
    %vm734 = vcmask 1042434
    %v735 = vsel %vm734, %v691, %v733
    %vm736 = vcmask 1043459
    %v737 = vsel %vm736, %v700, %v735
    %vm738 = vcmask 1044484
    %v739 = vsel %vm738, %v709, %v737
    %vm740 = vcmask 1045509
    %v741 = vsel %vm740, %v718, %v739
    %v742 = vsel %vm664, %v741, 0
    %744 = vmatprep.subr.mxu0 0.0
    %745 = vmatpush1.msra.mxu0 %v719
    %746 = vmatprep.subr.mxu0 0.0
    %747 = vmatpush1.msra.mxu0 %v720
    %748 = vmatprep.subr.mxu0 0.0
    %749 = vmatpush1.msra.mxu0 0.0
    %750 = vmatprep.subr.mxu0 0.0
    %751 = vmatpush1.msra.mxu0 0.0
    %752 = vmatprep.subr.mxu0 0.0
    %753 = vmatpush1.msra.mxu0 0.0
    %754 = vmatprep.subr.mxu0 0.0
    %755 = vmatpush1.msra.mxu0 0.0
    %756 = vmatprep.subr.mxu0 0.0
    %757 = vmatpush1.msra.mxu0 0.0
    %758 = vmatprep.subr.mxu0 0.0
    %759 = vmatpush1.msra.mxu0 0.0
    %760 = vmatprep.subr.mxu0 0.0
    %761 = vmatpush1.msra.mxu0 0.0
    %762 = vmatprep.subr.mxu0 0.0
    %763 = vmatpush1.msra.mxu0 0.0
    %764 = vmatprep.subr.mxu0 0.0
    %765 = vmatpush1.msra.mxu0 0.0
    %766 = vmatprep.subr.mxu0 0.0
    %767 = vmatpush1.msra.mxu0 0.0
    %768 = vmatprep.subr.mxu0 0.0
    %769 = vmatpush1.msra.mxu0 0.0
    %770 = vmatprep.subr.mxu0 0.0
    %771 = vmatpush1.msra.mxu0 0.0
    %772 = vmatprep.subr.mxu0 0.0
    %773 = vmatpush1.msra.mxu0 0.0
    %774 = vmatprep.subr.mxu0 0.0
    %775 = vmatpush1.msra.mxu0 0.0
    %776 = vmatprep.subr.mxu0 0.0
    %777 = vmatpush1.msra.mxu0 0.0
    %778 = vmatprep.subr.mxu0 0.0
    %779 = vmatpush1.msra.mxu0 0.0
    %780 = vmatprep.subr.mxu0 0.0
    %781 = vmatpush1.msra.mxu0 0.0
    %782 = vmatprep.subr.mxu0 0.0
    %783 = vmatpush1.msra.mxu0 0.0
    %784 = vmatprep.subr.mxu0 0.0
    %785 = vmatpush1.msra.mxu0 0.0
    %786 = vmatprep.subr.mxu0 0.0
    %787 = vmatpush1.msra.mxu0 0.0
    %788 = vmatprep.subr.mxu0 0.0
    %789 = vmatpush1.msra.mxu0 0.0
    %790 = vmatprep.subr.mxu0 0.0
    %791 = vmatpush1.msra.mxu0 0.0
    %792 = vmatprep.subr.mxu0 0.0
    %793 = vmatpush1.msra.mxu0 0.0
    %794 = vmatprep.subr.mxu0 0.0
    %795 = vmatpush1.msra.mxu0 0.0
    %796 = vmatprep.subr.mxu0 0.0
    %797 = vmatpush1.msra.mxu0 0.0
    %798 = vmatprep.subr.mxu0 0.0
    %799 = vmatpush1.msra.mxu0 0.0
    %800 = vmatprep.subr.mxu0 0.0
    %801 = vmatpush1.msra.mxu0 0.0
    %802 = vmatprep.subr.mxu0 0.0
    %803 = vmatpush1.msra.mxu0 0.0
    %804 = vmatprep.subr.mxu0 0.0
    %805 = vmatpush1.msra.mxu0 0.0
    %806 = vmatprep.subr.mxu0 0.0
    %807 = vmatpush1.msra.mxu0 0.0
    %808 = vmatprep.mubr.f32.mxu0 0.0
    %809 = vmatmul.mubr.f32.gmra.mrb[0].mxu0 %v742
    %v810 = vpop.f32.mrb[0].mxu0
    %v811 = vadd.f32 %v725, %v810
    %v812 = vpop.f32.mrb[0].mxu0
    %813 = vdwg.mxu0
    %vm814 = vcmask 521216
    %815 = vst.msk [vmem:[%s2] sm:$0x3f] %vm814, %v811
    // Predicated region
    $region14: #{model_g_forward.1} parent=1 // pred_check
      _
    $region15: #{model_g_forward.1} parent=1 // pred_check_branch
      %817 = sbr.rel (0) target = $region17
    $region16: #{model_g_forward.1} parent=1 // pred_region
      _
    $region17: #{model_g_forward.1} parent=1 // pred_fallthru
      _
    // Predicated region
    $region18: #{model_g_forward.1} parent=1 // pred_check
      _
    $region19: #{model_g_forward.1} parent=1 // pred_check_branch
      %819 = sbr.rel (0) target = $region21
    $region20: #{model_g_forward.1} parent=1 // pred_region
      _
    $region21: #{model_g_forward.1} parent=1 // pred_fallthru
      _
    %820 = vsyncpa [#allocation3], 1

</llo_original>
